<compile_context>
chip_gen: v7x
topology: tpu7x:2x2x1
jax: 0.10.0
libtpu: 0.0.40
codegen_flags: <defaults>
</compile_context>

<pallas_src>
import jax
import jax.numpy as jnp
from jax.experimental import pallas as pl
from jax.experimental.pallas import tpu as pltpu


def _round_up(a: int, b: int) -> int:
    return (a + b - 1) // b * b


def _phys_vmem_bytes() -> int:
    """Physical per-core VMEM, used to pick tn / buffer depth / vmem limit per
    generation (128 MiB on v5e/v6e, 64 MiB on v7x).  Conservative fallback."""
    try:
        return int(pltpu.get_tpu_info().vmem_capacity_bytes)
    except Exception:
        return 64 << 20


# -----------------------------------------------------------------------------
# Load-time parameter prep (NOT in the per-call path).
# -----------------------------------------------------------------------------
_TN_MAX = 2048   # largest vocab tile ever used; load-time padding is a multiple


def prepare_head_weight(head_w):
    """Pre-transpose the (V, D) Linear weight to (D, V_pad) and zero-pad vocab
    ONCE at model-load time.  For real vocabs (e.g. 50k) the previous per-call
    jnp.pad copied the whole (D, V) bf16 matrix through HBM every forward."""
    V, D = head_w.shape
    wt = jnp.asarray(head_w).T                       # (D, V): vocab lane-dense
    V_pad = _round_up(V, 128)
    if V_pad > _TN_MAX:
        V_pad = _round_up(V_pad, _TN_MAX)            # any tn in {128..2048} divides it
    if V_pad != V:
        wt = jnp.pad(wt, ((0, 0), (0, V_pad - V)))   # zero cols, sliced off at the end
    return jnp.asarray(wt), V


# -----------------------------------------------------------------------------
# Kernels.
# -----------------------------------------------------------------------------
def ln_kernel(x_ref, g_ref, b_ref, y_ref):
    """Row-tiled LayerNorm prepass: y = LN(x) * gamma + beta (f32 math, bf16 out).

    x_ref : (tml, D) bf16, g_ref/b_ref : (1, D) bf16, y_ref : (tml, D) bf16.
    """
    x = x_ref[...].astype(jnp.float32)
    mean = jnp.mean(x, axis=-1, keepdims=True)
    xc = x - mean
    var = jnp.mean(xc * xc, axis=-1, keepdims=True)
    xn = xc * jax.lax.rsqrt(var + 1e-5)
    y_ref[...] = (xn * g_ref[...].astype(jnp.float32)
                  + b_ref[...].astype(jnp.float32)).astype(y_ref.dtype)


def head_matmul_kernel(y_ref, wt_ref, o_ref):
    """Pure head matmul: one (tm, tn) logits tile on the MXU, f32 accumulation.

    y_ref : (tm, D) bf16 normalized activations, wt_ref : (D, tn) bf16,
    o_ref : (tm, tn) bf16 logits tile.
    """
    o_ref[...] = jnp.dot(y_ref[...], wt_ref[...],
                         preferred_element_type=jnp.float32).astype(o_ref.dtype)


# -----------------------------------------------------------------------------
# Wrappers.
# -----------------------------------------------------------------------------
def _ln_tile_rows(m_pad: int, d: int) -> int:
    """Row tile for the LN prepass; capped so f32 intermediates stay small on
    v7x even for very large D.  m_pad is always a multiple of 16."""
    cap = 256 if d <= 4096 else 128
    for t in (cap, 128, 64, 32, 16):
        if t <= m_pad and m_pad % t == 0:
            return t
    return m_pad


def _layernorm(x, g, b, *, budget):
    m_pad, d = x.shape
    tml = _ln_tile_rows(m_pad, d)
    # double-buffered bf16 in/out tiles + ~4 f32 working copies + slack
    est = 8 * tml * d + 16 * tml * d + (2 << 20)
    vmem_limit = int(max(32 << 20, min(budget, est)))
    return pl.pallas_call(
        ln_kernel,
        out_shape=jax.ShapeDtypeStruct((m_pad, d), jnp.bfloat16),
        grid_spec=pltpu.PrefetchScalarGridSpec(
            num_scalar_prefetch=0,
            grid=(m_pad // tml,),
            in_specs=[
                pl.BlockSpec((tml, d), lambda i: (i, 0)),
                pl.BlockSpec((1, d), lambda i: (0, 0)),
                pl.BlockSpec((1, d), lambda i: (0, 0)),
            ],
            out_specs=pl.BlockSpec((tml, d), lambda i: (i, 0)),
        ),
        compiler_params=pltpu.CompilerParams(
            dimension_semantics=("parallel",),
            vmem_limit_bytes=vmem_limit,
        ),
    )(x, g.reshape(1, d), b.reshape(1, d))


def _head_matmul(y, wt, *, tm, tn, depth, vmem_limit):
    m_pad, d = y.shape
    _, v_pad = wt.shape
    nrow = m_pad // tm
    nvoc = v_pad // tn

    def _wt_spec(idx_map):
        # Deeper weight buffering only pays off (and only makes sense) when
        # there are at least `depth` distinct vocab tiles to look ahead to.
        if depth > 2 and nvoc >= depth:
            try:
                return pl.BlockSpec((d, tn), idx_map,
                                    pipeline_mode=pl.Buffered(depth))
            except TypeError:   # graceful fallback if pipeline_mode unsupported
                pass
        return pl.BlockSpec((d, tn), idx_map)

    if nrow == 1:
        # Decode / short prefill: keep the normalized activations RESIDENT
        # (constant index map => DMA'd once) and drive a 1-D vocab grid.
        grid = (nvoc,)
        in_specs = [
            pl.BlockSpec((m_pad, d), lambda j: (0, 0)),
            _wt_spec(lambda j: (0, j)),
        ]
        out_specs = pl.BlockSpec((m_pad, tn), lambda j: (0, j))
        semantics = ("parallel",)
    else:
        # Prefill: vocab OUTER (weight tile streamed from HBM exactly once and
        # the axis the v7x megacore shards -> weight read once per chip),
        # rows INNER sequential.
        grid = (nvoc, nrow)
        in_specs = [
            pl.BlockSpec((tm, d), lambda j, i: (i, 0)),
            _wt_spec(lambda j, i: (0, j)),
        ]
        out_specs = pl.BlockSpec((tm, tn), lambda j, i: (i, j))
        semantics = ("parallel", "arbitrary")

    return pl.pallas_call(
        head_matmul_kernel,
        out_shape=jax.ShapeDtypeStruct((m_pad, v_pad), jnp.bfloat16),
        grid_spec=pltpu.PrefetchScalarGridSpec(
            num_scalar_prefetch=0,
            grid=grid,
            in_specs=in_specs,
            out_specs=out_specs,
        ),
        compiler_params=pltpu.CompilerParams(
            dimension_semantics=semantics,
            vmem_limit_bytes=vmem_limit,
        ),
    )(y, wt)


def model_framework_forward(tokens, emb_w, ln_g, ln_b, head_wt_padded, n_vocab,
                            *, tm=512, tn_pref=None):
    """Embedding -> (placeholder Blocks) -> LayerNorm -> head Linear (no bias).

    `head_wt_padded` is the output of `prepare_head_weight` (load-time
    transpose + vocab padding); `n_vocab` is the original vocab size.
    """
    B, T = tokens.shape
    D, V_pad = head_wt_padded.shape
    M = B * T

    phys = _phys_vmem_bytes()
    budget = phys * 3 // 4          # leave headroom below physical VMEM

    # --- row tiling ----------------------------------------------------------
    M_pad = _round_up(M, 16)
    if M_pad <= tm:
        tm = M_pad                  # single row tile -> resident-activation path
    else:
        M_pad = _round_up(M, tm)    # tm=512 lengthens per-step MXU work so the
                                    # next weight tile's DMA stays hidden

    # --- vocab tiling / buffering, sized from the chip's VMEM -----------------
    if tn_pref is None:
        tn_pref = 2048 if phys >= (100 << 20) else 1024   # big tiles on v5e/v6e
    tn = V_pad if V_pad <= tn_pref else tn_pref           # V_pad % tn == 0 by construction

    def mm_vmem(depth_, tn_):
        return (depth_ * D * tn_ * 2      # weight tiles (bf16, depth-buffered)
                + 2 * tm * D * 2          # activation tiles (bf16, double-buffered)
                + 2 * tm * tn_ * 2        # output tiles (bf16, double-buffered)
                + tm * tn_ * 4            # f32 dot result before bf16 cast
                + (4 << 20))              # compiler-internal scratch slack

    depth = 3                             # hide weight-tile DMA at vocab boundaries
    if mm_vmem(depth, tn) > budget:
        depth = 2                         # VMEM-tight (v7x, large D): shallower
    while mm_vmem(depth, tn) > budget and tn > 1024 and V_pad % (tn // 2) == 0:
        tn //= 2                          # ...or narrower vocab tiles
    vmem_limit = int(max(32 << 20, min(budget, mm_vmem(depth, tn) + (4 << 20))))

    # --- embedding gather (plain-JAX glue); pad TOKENS, not the (M, D) matrix --
    tok = tokens.reshape(-1)
    if M_pad != M:
        tok = jnp.pad(tok, (0, M_pad - M))        # cheap int32 pad; rows sliced off
    x = jnp.take(emb_w, tok, axis=0)              # (M_pad, D) bf16
    # TODO(synk): RWKV `Block` modules in the source are empty placeholders
    # (no forward method); they contribute no compute and are skipped here.
    # TODO(synk): the embedding gather could be fused into the LN prepass via
    # scalar-prefetched token ids + per-row DMA; left as jnp.take glue for now.

    # --- LayerNorm prepass: computed once per row, not once per vocab tile ----
    y = _layernorm(x, ln_g, ln_b, budget=budget)

    # --- head matmul (vocab-outer, weight-read-once) ---------------------------
    out = _head_matmul(y, head_wt_padded, tm=tm, tn=tn, depth=depth,
                       vmem_limit=vmem_limit)

    return out[:M, :n_vocab].reshape(B, T, n_vocab)


# -----------------------------------------------------------------------------
# Demo / self-check.
# -----------------------------------------------------------------------------
def _reference(tokens, emb_w, ln_g, ln_b, head_w):
    """Plain-JAX reference with the same numerics path."""
    V = head_w.shape[0]
    xr = jnp.take(emb_w, tokens.reshape(-1), axis=0).astype(jnp.float32)
    mu = xr.mean(-1, keepdims=True)
    xc = xr - mu
    var = (xc * xc).mean(-1, keepdims=True)
    yr = (xc * jax.lax.rsqrt(var + 1e-5)) * ln_g.astype(jnp.float32) \
         + ln_b.astype(jnp.float32)
    logits = jnp.dot(yr.astype(jnp.bfloat16), jnp.asarray(head_w).T,
                     preferred_element_type=jnp.float32).astype(jnp.bfloat16)
    return logits.reshape(tokens.shape + (V,))


if __name__ == "__main__":
    # Small, deterministic synthetic "checkpoint":
    #   head.weight: (vocab_size, n_embd) => n_embd=32, vocab_size=64
    #   head_size=8 -> n_head=4; n_layer=2 placeholder blocks (no compute).
    vocab_size, n_embd = 64, 32

    key = jax.random.PRNGKey(0)
    k_emb, k_head, k_g, k_b, k_tok1, k_tok2 = jax.random.split(key, 6)

    emb_w = (jax.random.normal(k_emb, (vocab_size, n_embd), jnp.float32)
             * 0.02).astype(jnp.bfloat16)
    head_w = (jax.random.normal(k_head, (vocab_size, n_embd), jnp.float32)
              * 0.02).astype(jnp.bfloat16)
    ln_g = (1.0 + 0.1 * jax.random.normal(k_g, (n_embd,), jnp.float32)
            ).astype(jnp.bfloat16)
    ln_b = (0.1 * jax.random.normal(k_b, (n_embd,), jnp.float32)
            ).astype(jnp.bfloat16)

    # Load-time prep (transpose + vocab padding), hoisted out of the forward.
    head_wt_padded, n_vocab = prepare_head_weight(head_w)

    # --- test 1: decode-sized input -> resident-activation 1-D vocab grid -----
    B1, T1 = 2, 8
    tok1 = jax.random.randint(k_tok1, (B1, T1), 0, vocab_size, jnp.int32)
    logits1 = model_framework_forward(tok1, emb_w, ln_g, ln_b,
                                      head_wt_padded, n_vocab)
    jax.block_until_ready(logits1)
    assert logits1.shape == (B1, T1, vocab_size) and logits1.dtype == jnp.bfloat16
    ref1 = _reference(tok1, emb_w, ln_g, ln_b, head_w)
    assert jnp.allclose(logits1.astype(jnp.float32), ref1.astype(jnp.float32),
                        atol=2e-2, rtol=2e-2)

    # --- test 2: longer input -> 2-D (vocab-outer, rows-inner) grid path ------
    B2, T2 = 4, 160
    tok2 = jax.random.randint(k_tok2, (B2, T2), 0, vocab_size, jnp.int32)
    logits2 = model_framework_forward(tok2, emb_w, ln_g, ln_b,
                                      head_wt_padded, n_vocab)
    jax.block_until_ready(logits2)
    assert logits2.shape == (B2, T2, vocab_size) and logits2.dtype == jnp.bfloat16
    ref2 = _reference(tok2, emb_w, ln_g, ln_b, head_w)
    assert jnp.allclose(logits2.astype(jnp.float32), ref2.astype(jnp.float32),
                        atol=2e-2, rtol=2e-2)

    print("KERNEL_OK")
</pallas_src>

<mosaic_0001>
module attributes {stable_mosaic.version = 11 : i64} {
  func.func @ln_kernel(%arg0: i32, %arg1: memref<16x32xbf16, #tpu.memory_space<vmem>>, %arg2: memref<1x32xbf16, #tpu.memory_space<vmem>>, %arg3: memref<1x32xbf16, #tpu.memory_space<vmem>>, %arg4: memref<16x32xbf16, #tpu.memory_space<vmem>>) attributes {dimension_semantics = [#tpu.dimension_semantics<parallel>], iteration_bounds = array<i64: 1>, scalar_prefetch = 0 : i64, scratch_operands = 0 : i64, tpu.core_type = #tpu.core_type<tc>, window_params = [{transform_indices = @transform_0, window_bounds = array<i64: 16, 32>}, {pipeline_mode = #tpu.pipeline_mode<synchronous>, transform_indices = @transform_1, window_bounds = array<i64: 1, 32>}, {pipeline_mode = #tpu.pipeline_mode<synchronous>, transform_indices = @transform_2, window_bounds = array<i64: 1, 32>}, {transform_indices = @transform_3, window_bounds = array<i64: 16, 32>}]} {
    %c0 = arith.constant 0 : index
    %c0_0 = arith.constant 0 : index
    %0 = vector.load %arg1[%c0, %c0_0] : memref<16x32xbf16, #tpu.memory_space<vmem>>, vector<16x32xbf16>
    %1 = arith.extf %0 : vector<16x32xbf16> to vector<16x32xf32>
    %cst = arith.constant dense<0.000000e+00> : vector<16xf32>
    %2 = vector.multi_reduction <add>, %1, %cst [1] : vector<16x32xf32> to vector<16xf32>
    %3 = vector.shape_cast %2 : vector<16xf32> to vector<16x1xf32>
    %cst_1 = arith.constant 3.200000e+01 : f32
    %4 = vector.broadcast %cst_1 : f32 to vector<16x1xf32>
    %5 = arith.divf %3, %4 : vector<16x1xf32>
    %6 = vector.broadcast %5 : vector<16x1xf32> to vector<16x32xf32>
    %7 = arith.subf %1, %6 : vector<16x32xf32>
    %8 = arith.mulf %7, %7 : vector<16x32xf32>
    %cst_2 = arith.constant dense<0.000000e+00> : vector<16xf32>
    %9 = vector.multi_reduction <add>, %8, %cst_2 [1] : vector<16x32xf32> to vector<16xf32>
    %10 = vector.shape_cast %9 : vector<16xf32> to vector<16x1xf32>
    %cst_3 = arith.constant 3.200000e+01 : f32
    %11 = vector.broadcast %cst_3 : f32 to vector<16x1xf32>
    %12 = arith.divf %10, %11 : vector<16x1xf32>
    %cst_4 = arith.constant 9.99999974E-6 : f32
    %13 = vector.broadcast %cst_4 : f32 to vector<16x1xf32>
    %14 = arith.addf %12, %13 : vector<16x1xf32>
    %15 = math.rsqrt %14 : vector<16x1xf32>
    %16 = vector.broadcast %15 : vector<16x1xf32> to vector<16x32xf32>
    %17 = arith.mulf %7, %16 : vector<16x32xf32>
    %c0_5 = arith.constant 0 : index
    %c0_6 = arith.constant 0 : index
    %18 = vector.load %arg2[%c0_5, %c0_6] : memref<1x32xbf16, #tpu.memory_space<vmem>>, vector<1x32xbf16>
    %19 = arith.extf %18 : vector<1x32xbf16> to vector<1x32xf32>
    %20 = vector.broadcast %19 : vector<1x32xf32> to vector<16x32xf32>
    %21 = arith.mulf %17, %20 : vector<16x32xf32>
    %c0_7 = arith.constant 0 : index
    %c0_8 = arith.constant 0 : index
    %22 = vector.load %arg3[%c0_7, %c0_8] : memref<1x32xbf16, #tpu.memory_space<vmem>>, vector<1x32xbf16>
    %23 = arith.extf %22 : vector<1x32xbf16> to vector<1x32xf32>
    %24 = vector.broadcast %23 : vector<1x32xf32> to vector<16x32xf32>
    %25 = arith.addf %21, %24 : vector<16x32xf32>
    %26 = arith.truncf %25 : vector<16x32xf32> to vector<16x32xbf16>
    %c0_9 = arith.constant 0 : index
    %c0_10 = arith.constant 0 : index
    %27 = vector.load %arg4[%c0_9, %c0_10] : memref<16x32xbf16, #tpu.memory_space<vmem>>, vector<16x32xbf16>
    tpu.vector_store %arg4[%c0_9, %c0_10], %26 {strides = array<i32>} : memref<16x32xbf16, #tpu.memory_space<vmem>>, vector<16x32xbf16>,
    return
  }
  func.func @transform_0(%arg0: i32) -> (i32, i32) {
    %c0_i32 = arith.constant 0 : i32
    %c0_i32_0 = arith.constant 0 : i32
    return %arg0, %c0_i32 : i32, i32
  }
  func.func @transform_1(%arg0: i32) -> (i32, i32) {
    %c0_i32 = arith.constant 0 : i32
    %c0_i32_0 = arith.constant 0 : i32
    %c0_i32_1 = arith.constant 0 : i32
    return %c0_i32, %c0_i32_0 : i32, i32
  }
  func.func @transform_2(%arg0: i32) -> (i32, i32) {
    %c0_i32 = arith.constant 0 : i32
    %c0_i32_0 = arith.constant 0 : i32
    %c0_i32_1 = arith.constant 0 : i32
    return %c0_i32, %c0_i32_0 : i32, i32
  }
  func.func @transform_3(%arg0: i32) -> (i32, i32) {
    %c0_i32 = arith.constant 0 : i32
    %c0_i32_0 = arith.constant 0 : i32
    return %arg0, %c0_i32 : i32, i32
  }
}

</mosaic_0001>

<llo_original>
// kernel: tpu_custom_call.1
$region0: #{tpu_custom_call.1}
  #allocation0 [shape = 'u32[]', space=smem, size = 0x4, offset = 0x4, fixed_abs, tag = 'smem constant byte address 0x4 - core index']
  #allocation1 [shape = 'u32[144,128]{1,0:T(1,128)}', space=vmem, size = 0x12000, scoped, tag = 'internal scratch']
  %s0 = inlined_call_operand.hbm [shape: bf16[16,32], index: 0, kind: input, shape index: {}]
  %s1 = inlined_call_operand.vmem [shape: bf16[1,32], index: 1, kind: input, shape index: {}]
  %s2 = inlined_call_operand.vmem [shape: bf16[1,32], index: 2, kind: input, shape index: {}]
  %s3 = inlined_call_operand.hbm [shape: bf16[16,32], index: 3, kind: output, shape index: {}]
  %s4 = sld [smem:[#allocation0]]
  $region26: #{tpu_custom_call.1} parent=0
    _
  %s6 = ssub.s32 1, %s4
  %s7 = scalar_select 0, %s6, %s4
  $region1: #{tpu_custom_call.1} parent=0
    #allocation2 [shape = 'u8[4096]{0}', space=vmem, size = 0x1000, scoped, tag = 'input window, operand 0, single buffered']
    #allocation3 [shape = 's32[1]{0}', space=sflag, size = 0x4, scoped, tag = 'scoped memory for tpu_custom_call.1']
    #allocation4 [shape = 's32[1]{0}', space=sflag, size = 0x4, scoped, tag = 'scoped memory for tpu_custom_call.1']
    #allocation5 [shape = 'u8[4096]{0}', space=vmem, size = 0x1000, scoped, tag = 'output window, operand 0, single buffered']
    %8 = vsyncpa [#allocation3], 0
    %9 = vsyncpa [#allocation4], 0
    // Predicated region
    $region2: #{tpu_custom_call.1} parent=1 // pred_check
      _
    $region3: #{tpu_custom_call.1} parent=1 // pred_check_branch
      %11 = sbr.rel (0) target = $region5
    $region4: #{tpu_custom_call.1} parent=1 // pred_region
      %s13 = ssub.s32 128, 128
      %14 = vsyncadd [#allocation3], %s13
      %s15 = sshll.u32 [#allocation2], 4
      %s16 = int_to_ptr.vmem [resolvable:$true] %s15
      %21 = dma.hbm_to_vmem [thread:$0]  %s0, 128, %s16, [#allocation3], 64, 64, 4
    $region5: #{tpu_custom_call.1} parent=1 // pred_fallthru
      _
    // Predicated region
    $region6: #{tpu_custom_call.1} parent=1 // pred_check
      _
    $region7: #{tpu_custom_call.1} parent=1 // pred_check_branch
      %23 = sbr.rel (0) target = $region9
    $region8: #{tpu_custom_call.1} parent=1 // pred_region
      _
    $region9: #{tpu_custom_call.1} parent=1 // pred_fallthru
      _
    // Predicated region
    $region10: #{tpu_custom_call.1} parent=1 // pred_check
      _
    $region11: #{tpu_custom_call.1} parent=1 // pred_check_branch
      %25 = sbr.rel (0) target = $region13
    $region12: #{tpu_custom_call.1} parent=1 // pred_region
      _
    $region13: #{tpu_custom_call.1} parent=1 // pred_fallthru
      _
    // Predicated region
    $region14: #{tpu_custom_call.1} parent=1 // pred_check
      _
    $region15: #{tpu_custom_call.1} parent=1 // pred_check_branch
      %27 = sbr.rel (0) target = $region17
    $region16: #{tpu_custom_call.1} parent=1 // pred_region
      %28 = dma.done [#allocation3], 128
    $region17: #{tpu_custom_call.1} parent=1 // pred_fallthru
      _
    %v29 = vld [vmem:[#allocation2] sm:$0xf]
    %v30 = vld [vmem:[#allocation2 + $0x4] sm:$0xf]
    %v31 = vunpack.c.l.bf16 %v29
    %v32 = vunpack.c.l.bf16 %v30
    %vm33 = vcmask 261120
    %v34 = vsel %vm33, %v31, 0.0
    %35 = vadd.xlane.f32.xlu0 %v34
    %v36 = vpop.xlane.xlu0 %35
    %v37 = vsel %vm33, %v32, 0.0
    %38 = vadd.xlane.f32.xlu0 %v37
    %v39 = vpop.xlane.xlu0 %38
    %v40 = vrcp.pop 32.0
    %v41 = vmul.f32 %v36, %v40
    %v42 = vmul.f32 %v39, %v40
    %v43 = vsub.f32 %v31, %v41
    %v44 = vsub.f32 %v32, %v42
    %v45 = vmul.f32 %v43, %v43
    %v46 = vmul.f32 %v44, %v44
    %v47 = vsel %vm33, %v45, 0.0
    %48 = vadd.xlane.f32.xlu0 %v47
    %v49 = vpop.xlane.xlu0 %48
    %v50 = vsel %vm33, %v46, 0.0
    %51 = vadd.xlane.f32.xlu0 %v50
    %v52 = vpop.xlane.xlu0 %51
    %v53 = vmul.f32 %v49, %v40
    %v54 = vmul.f32 %v52, %v40
    %v55 = vadd.f32 %v53, 1e-05
    %v56 = vadd.f32 %v54, 1e-05
    %v57 = vrsqrt.pop %v55
    %v58 = vrsqrt.pop %v56
    %v59 = vmul.f32 %v43, %v57
    %v60 = vmul.f32 %v44, %v58
    %v61 = vld [vmem:[%s1] sm:$0x1]
    %v62 = vunpack.c.l.bf16 %v61
    %v63 = vlaneseq
    %v64 = vshrl.u32 %v63, 7
    %v65 = vsub.s32 0, %v64
    %v66 = vrot.slane %v62, %v65
    %v67 = vmul.f32 %v59, %v66
    %v68 = vmul.f32 %v60, %v66
    %v69 = vld [vmem:[%s2] sm:$0x1]
    %v70 = vunpack.c.l.bf16 %v69
    %v71 = vlaneseq
    %v72 = vshrl.u32 %v71, 7
    %v73 = vsub.s32 0, %v72
    %v74 = vrot.slane %v70, %v73
    %v75 = vadd.f32 %v67, %v74
    %v76 = vadd.f32 %v68, %v74
    %v77 = vpack.c.bf16 %v76, %v75
    %v79 = vunpack.c.l.b16 %v77
    %v80 = vunpack.c.h.b16 %v77
    %v81 = vpack.c.b16 %v79, %v79
    %v82 = vpack.c.b16 %v80, %v80
    %vm85 = vcmask 257024
    %86 = vst.msk [vmem:[#allocation5] sm:$0xf] %vm85, %v81
    %87 = vst.msk [vmem:[#allocation5 + $0x4] sm:$0xf] %vm85, %v82
    // Predicated region
    $region18: #{tpu_custom_call.1} parent=1 // pred_check
      _
    $region19: #{tpu_custom_call.1} parent=1 // pred_check_branch
      %89 = sbr.rel (0) target = $region21
    $region20: #{tpu_custom_call.1} parent=1 // pred_region
      %s91 = ssub.s32 128, 128
      %92 = vsyncadd [#allocation4], %s91
      %s93 = sshll.u32 [#allocation5], 4
      %s94 = int_to_ptr.vmem [resolvable:$true] %s93
      %99 = dma.vmem_to_hbm [thread:$0]  %s94, 128, %s3, [#allocation4], 64, 64, 4
    $region21: #{tpu_custom_call.1} parent=1 // pred_fallthru
      _
    // Predicated region
    $region22: #{tpu_custom_call.1} parent=1 // pred_check
      _
    $region23: #{tpu_custom_call.1} parent=1 // pred_check_branch
      %101 = sbr.rel (0) target = $region25
    $region24: #{tpu_custom_call.1} parent=1 // pred_region
      %102 = dma.done [#allocation4], 128
    $region25: #{tpu_custom_call.1} parent=1 // pred_fallthru
      _
    %103 = vsyncpa [#allocation3], 1
    %104 = vsyncpa [#allocation4], 1

</llo_original>
